<compile_context>
chip_gen: v5e
topology: v5e:2x2
jax: 0.10.0
libtpu: 0.0.40
codegen_flags: <defaults>
</compile_context>

<pallas_src>
import jax
import jax.numpy as jnp
from jax import lax
from jax.experimental import pallas as pl
from jax.experimental.pallas import tpu as pltpu

EPS = 1e-5          # nn.InstanceNorm1d default eps
NEG_SLOPE = 0.2     # nn.LeakyReLU(0.2)
_PREC_HI = jax.lax.Precision.HIGHEST   # wrapper-side / reference only


def _leaky(x):
    return jnp.where(x > 0, x, NEG_SLOPE * x)


def _shift_down(v):
    """v[:, m] -> v[:, m-1]; row 0 of every batch element becomes 0 (conv zero pad)."""
    z = jnp.zeros_like(v[:, :1, :])
    return jnp.concatenate([z, v[:, :-1, :]], axis=1)


def _shift_up(v):
    """v[:, m] -> v[:, m+1]; last row of every batch element becomes 0 (conv zero pad)."""
    z = jnp.zeros_like(v[:, :1, :])
    return jnp.concatenate([v[:, 1:, :], z], axis=1)


def _mm(a3, w, b=None):
    """(BT, Lr, K) x (K, N) matmul on the bf16 MXU path, f32 accumulation.

    `w` is already bf16 (stored bf16 in HBM); `a3` is cast once if not already bf16.
    """
    bt, lr, k = a3.shape
    y = jnp.dot(a3.reshape(bt * lr, k).astype(jnp.bfloat16), w,
                preferred_element_type=jnp.float32)
    y = y.reshape(bt, lr, w.shape[1])
    return y if b is None else y + b


def _conv3(v, w3, b):
    """Conv1d k=3, stride=1, pad=1 (channels-last, per batch elem) as ONE matmul.

    v: (BT, Lr, C) f32, w3: (3C, Co) bf16 fused taps [W0; W1; W2], b: (1, Co) f32.
    The shifted concat is built directly in bf16 (cast once) to halve the largest
    live buffer and its vld/vst traffic.
    For Co >= 128, three accumulating matmuls over the shifted views (no (BT,Lr,3Co)
    materialization) can be faster on v5e/v7x — not needed at these channel counts.
    """
    vb = v.astype(jnp.bfloat16)
    x3 = jnp.concatenate([_shift_down(vb), vb, _shift_up(vb)], axis=-1)   # (BT,Lr,3C)
    return _mm(x3, w3, b)


def _cin(x, alpha, beta):
    """InstanceNorm1d (affine=False, biased var) + CIN affine, fused into one FMA pass.

    x: (BT, L, C) f32; alpha/beta: (BT, 1, C) f32.
    y = alpha * (x - mu) * rsqrt(var + eps) + beta  ==  x*scale + (beta - mu*scale).
    """
    mu = jnp.mean(x, axis=1, keepdims=True)
    var = jnp.mean(x * x, axis=1, keepdims=True) - mu * mu
    scale = alpha * lax.rsqrt(var + EPS)
    return x * scale + (beta - mu * scale)


def conditional_down_kernel(xe_ref, xo_ref, ab_ref, cw_ref, c1w_ref, c23_ref, b_ref,
                            o_ref):
    xe = xe_ref[...]                 # (BT, Lh, Cin)  bf16, x at even time steps
    xo = xo_ref[...]                 # (BT, Lh, Cin)  bf16, x at odd  time steps
    ab = ab_ref[...]                 # (BT, 4, Co)    f32  [alpha1, beta1, alpha2, beta2]
    biases = b_ref[...]              # (4, Co)        f32  [0.5*conv_b, c1b, c2b, c3b]
    conv_b = biases[0:1]
    c1b = biases[1:2]
    c2b = biases[2:3]
    c3b = biases[3:4]
    bt = xe.shape[0]

    # --- Conditional_Down.conv (k=3, pad=1) + LeakyReLU + AvgPool(2,2), fused -------
    # conv[2m]   needs rows [x[2m-1], x[2m],   x[2m+1]] = [xo[m-1], xe[m], xo[m]]
    # conv[2m+1] needs rows [x[2m],   x[2m+1], x[2m+2]] = [xe[m],   xo[m], xe[m+1]]
    # Both evaluated by ONE matmul (stacked along the leading axis, same RHS).
    a_even = jnp.concatenate([_shift_down(xo), xe, xo], axis=-1)        # (BT, Lh, 3Cin)
    a_odd = jnp.concatenate([xe, xo, _shift_up(xe)], axis=-1)           # (BT, Lh, 3Cin)
    a_eo = jnp.concatenate([a_even, a_odd], axis=0)                     # (2BT, Lh, 3Cin)
    m = _leaky(_mm(a_eo, cw_ref[...], conv_b))                          # (2BT, Lh, Co)
    # 0.5 AvgPool factor already folded into cw3 / conv_b -> plain add here.
    h = m[:bt] + m[bt:]                                                 # (BT, Lh, Co)

    # --- Conditional_ResBlock --------------------------------------------------------
    # CIN #1 (fused norm+affine)
    p1 = _cin(h, ab[:, 0:1, :], ab[:, 1:2, :])                          # (BT, Lh, Co)
    conv1_out = _mm(p1, c1w_ref[...], c1b)                              # 1x1 conv
    act1 = _leaky(p1)              # matches torch: LeakyReLU of processed1

    # CIN #2 (fused norm+affine)
    p2 = _cin(act1, ab[:, 2:3, :], ab[:, 3:4, :])

    conv2_out = _conv3(p2, c23_ref[0], c2b)
    act2 = _leaky(conv2_out)
    conv3_out = _conv3(act2, c23_ref[1], c3b)

    res = conv3_out + conv1_out                                         # (BT, Lh, Co)
    # write NCL directly so the wrapper does no output relayout.
    o_ref[...] = jnp.transpose(res, (0, 2, 1)).astype(o_ref.dtype)


def _vmem_limit_bytes():
    """Scoped-VMEM request: ~3/4 of physical, capped at 96 MiB (v7x=64 MiB physical)."""
    try:
        cap = int(pltpu.get_tpu_info().vmem_capacity_bytes)
    except Exception:
        cap = 64 * 1024 * 1024                     # v7x-safe fallback
    return max(32 * 1024 * 1024, min(3 * cap // 4, 96 * 1024 * 1024))


def conditional_down(x_ncl, z_ncl, kp, *, batch_tile=8):
    """x_ncl: (B, Cin, L)  z_ncl: (B, Z, 1)  -> (B, Cout, L//2)  (PyTorch NCL)."""
    B, Cin, L = x_ncl.shape
    assert L % 2 == 0, "AvgPool1d(2,2) fusion assumes even L"
    Lh = L // 2
    Co = kp["bias"].shape[-1]

    x = x_ncl.astype(jnp.float32)
    z2 = z_ncl[:, :, 0].astype(jnp.float32)                 # (B, Z)

    # CIN alpha/beta: tiny (B,Z)x(Z,Co) GEMMs done exactly in f32 in the wrapper.
    alpha1 = jnp.dot(z2, kp["a1w"], precision=_PREC_HI) + kp["a1b"]
    beta1 = jnp.dot(z2, kp["b1w"], precision=_PREC_HI) + kp["b1b"]
    alpha2 = jnp.dot(z2, kp["a2w"], precision=_PREC_HI) + kp["a2b"]
    beta2 = jnp.dot(z2, kp["b2w"], precision=_PREC_HI) + kp["b2b"]
    ab = jnp.stack([alpha1, beta1, alpha2, beta2], axis=1)  # (B, 4, Co) f32

    # even / odd time samples, channels-last, bf16 (they are matmul operands only).
    x_nlc = jnp.transpose(x, (0, 2, 1))                     # (B, L, Cin)
    xe = x_nlc[:, 0::2, :].astype(jnp.bfloat16)             # (B, Lh, Cin)
    xo = x_nlc[:, 1::2, :].astype(jnp.bfloat16)             # (B, Lh, Cin)

    # Batch-tile heuristic:
    #  * cap BT at ceil(B/2) so the "parallel" grid has >= 2 steps (both v7x TCs busy);
    #  * cap BT so the estimated per-step footprint (~14 live (BT,Lh,Co) f32 tiles,
    #    bf16 3C-wide concats, double-buffered I/O) stays well under the VMEM limit.
    vmem_limit = _vmem_limit_bytes()
    BT = max(1, min(batch_tile, pl.cdiv(B, 2)))
    per_b = (14 * Lh * Co * 4                         # f32 live tiles
             + 4 * Lh * 3 * max(Cin, Co) * 2          # bf16 shifted concats
             + 4 * Lh * Cin * 2 + 2 * Co * Lh * 4)    # double-buffered in/out blocks
    BT = max(1, min(BT, int(0.6 * vmem_limit) // max(per_b, 1)))
    Bp = ((B + BT - 1) // BT) * BT
    if Bp != B:
        pad = [(0, Bp - B), (0, 0), (0, 0)]
        xe = jnp.pad(xe, pad)
        xo = jnp.pad(xo, pad)
        ab = jnp.pad(ab, pad)   # alpha=beta=0 on padded rows -> harmless zeros

    def bmap(b):
        return (b, 0, 0)

    def wmap2(b):
        return (0, 0)

    def wmap3(b):
        return (0, 0, 0)

    # NOTE: for genuinely tiny channel counts a time-in-lanes (BT, C, Lh) layout would
    # fill lanes better and drop the final transpose; channels-last kept here since it
    # is the layout that scales to real (>=128) channel widths.
    out = pl.pallas_call(
        conditional_down_kernel,
        out_shape=jax.ShapeDtypeStruct((Bp, Co, Lh), jnp.float32),
        grid=(Bp // BT,),
        in_specs=[
            pl.BlockSpec((BT, Lh, Cin), bmap),       # x even (bf16)
            pl.BlockSpec((BT, Lh, Cin), bmap),       # x odd  (bf16)
            pl.BlockSpec((BT, 4, Co), bmap),         # packed alpha/beta (f32)
            pl.BlockSpec((3 * Cin, Co), wmap2),      # fused first-conv weight (bf16)
            pl.BlockSpec((Co, Co), wmap2),           # 1x1 conv weight (bf16)
            pl.BlockSpec((2, 3 * Co, Co), wmap3),    # fused conv2 / conv3 weights (bf16)
            pl.BlockSpec((4, Co), wmap2),            # packed biases (f32)
        ],
        out_specs=pl.BlockSpec((BT, Co, Lh), bmap),  # NCL output
        compiler_params=pltpu.CompilerParams(
            # batch-block axis is parallel -> shards across v7x's 2 TensorCores
            # (grid guaranteed >= 2 steps above); neutral on v5e/v6e.
            dimension_semantics=("parallel",),
            vmem_limit_bytes=vmem_limit,
        ),
    )(xe, xo, ab, kp["cw3"], kp["c1w"], kp["c23"], kp["bias"])

    return out[:B]                                          # already (B, Co, Lh) NCL


# ---------------------------- pure-JAX reference (exact f32) -----------------------
def _conv1d_ncl(x, w, b, pad):
    y = lax.conv_general_dilated(
        x, w, window_strides=(1,), padding=[(pad, pad)],
        dimension_numbers=("NCH", "OIH", "NCH"), precision=_PREC_HI)
    return y + b[None, :, None]


def _instnorm_ncl(x):
    mu = jnp.mean(x, axis=2, keepdims=True)
    var = jnp.mean((x - mu) ** 2, axis=2, keepdims=True)
    return (x - mu) / jnp.sqrt(var + EPS)


def ref_forward(x, z, tp):
    h = _leaky(_conv1d_ncl(x, tp["conv_w"], tp["conv_b"], 1))
    B, C, L = h.shape
    h = h.reshape(B, C, L // 2, 2).mean(-1)                 # AvgPool1d(2,2)

    xn1 = _instnorm_ncl(h)
    alpha1 = _conv1d_ncl(z, tp["a1w"], tp["a1b"], 0)
    beta1 = _conv1d_ncl(z, tp["b1w"], tp["b1b"], 0)
    p1 = alpha1 * xn1 + beta1
    conv1_out = _conv1d_ncl(p1, tp["c1w"], tp["c1b"], 0)
    act1 = _leaky(p1)

    xn2 = _instnorm_ncl(act1)
    alpha2 = _conv1d_ncl(z, tp["a2w"], tp["a2b"], 0)
    beta2 = _conv1d_ncl(z, tp["b2w"], tp["b2b"], 0)
    p2 = alpha2 * xn2 + beta2
    conv2_out = _conv1d_ncl(p2, tp["c2w"], tp["c2b"], 1)
    act2 = _leaky(conv2_out)
    conv3_out = _conv1d_ncl(act2, tp["c3w"], tp["c3b"], 1)
    return conv3_out + conv1_out


# ------------------------------- parameters ----------------------------------------
def make_params(key, in_channels, out_channels, num_latent):
    Ci, Co, Z = in_channels, out_channels, num_latent
    ks = jax.random.split(key, 16)
    init = lambda k, shape: 0.1 * jax.random.normal(k, shape, jnp.float32)

    # PyTorch-layout (Co, Ci, K) weights and (Co,) biases.
    tp = {
        "conv_w": init(ks[0], (Co, Ci, 3)), "conv_b": init(ks[1], (Co,)),
        "a1w": init(ks[2], (Co, Z, 1)),     "a1b": init(ks[3], (Co,)),
        "b1w": init(ks[4], (Co, Z, 1)),     "b1b": init(ks[5], (Co,)),
        "a2w": init(ks[6], (Co, Z, 1)),     "a2b": init(ks[7], (Co,)),
        "b2w": init(ks[8], (Co, Z, 1)),     "b2b": init(ks[9], (Co,)),
        "c1w": init(ks[10], (Co, Co, 1)),   "c1b": init(ks[11], (Co,)),
        "c2w": init(ks[12], (Co, Co, 3)),   "c2b": init(ks[13], (Co,)),
        "c3w": init(ks[14], (Co, Co, 3)),   "c3b": init(ks[15], (Co,)),
    }

    # Kernel layout: fused k=3 weights (3*Ci, Co) with tap-major rows [W0; W1; W2],
    # 1x1 weights (Ci, Co).  Conv weights are stored bf16 in HBM (MXU operands only);
    # biases and CIN alpha/beta weights stay f32.  The 0.5 AvgPool factor is folded
    # into the first conv's weight AND bias (exact, done in f32 before the bf16 cast;
    # LeakyReLU(0.5*y) == 0.5*LeakyReLU(y)).
    def k3f(w):  # (Co, Ci, 3) -> (3*Ci, Co)
        return jnp.transpose(w, (2, 1, 0)).reshape(3 * w.shape[1], w.shape[0])

    def k1(w):   # (Co, Ci, 1) -> (Ci, Co)
        return jnp.transpose(w[:, :, 0], (1, 0))

    kp = {
        "cw3": (0.5 * k3f(tp["conv_w"])).astype(jnp.bfloat16),
        "c1w": k1(tp["c1w"]).astype(jnp.bfloat16),
        "c23": jnp.stack([k3f(tp["c2w"]), k3f(tp["c3w"])], axis=0).astype(jnp.bfloat16),
        "bias": jnp.stack([0.5 * tp["conv_b"], tp["c1b"], tp["c2b"], tp["c3b"]], axis=0),
        "a1w": k1(tp["a1w"]), "a1b": tp["a1b"],
        "b1w": k1(tp["b1w"]), "b1b": tp["b1b"],
        "a2w": k1(tp["a2w"]), "a2b": tp["a2b"],
        "b2w": k1(tp["b2w"]), "b2b": tp["b2b"],
    }
    return tp, kp


if __name__ == "__main__":
    B, Cin, Cout, Z, L = 2, 4, 8, 6, 16

    key = jax.random.PRNGKey(0)
    kx, kz, kpk = jax.random.split(key, 3)
    x = jax.random.normal(kx, (B, Cin, L), jnp.float32)        # PyTorch NCL input
    condition = jax.random.normal(kz, (B, Z, 1), jnp.float32)  # latent, length 1

    torch_params, kernel_params = make_params(kpk, Cin, Cout, Z)

    out = jax.block_until_ready(conditional_down(x, condition, kernel_params))
    ref = jax.block_until_ready(ref_forward(x, condition, torch_params))

    assert out.shape == (B, Cout, L // 2), out.shape
    # Kernel matmuls run on the bf16 MXU path; compare against the exact f32 reference
    # with a correspondingly relaxed tolerance.
    max_err = float(jnp.max(jnp.abs(out - ref)))
    assert jnp.allclose(out, ref, rtol=3e-2, atol=3e-2), max_err

    print("KERNEL_OK")
</pallas_src>

<mosaic_0001>
module attributes {stable_mosaic.version = 11 : i64} {
  func.func @conditional_down_kernel(%arg0: i32, %arg1: memref<1x8x4xbf16, #tpu.memory_space<vmem>>, %arg2: memref<1x8x4xbf16, #tpu.memory_space<vmem>>, %arg3: memref<1x4x8xf32, #tpu.memory_space<vmem>>, %arg4: memref<12x8xbf16, #tpu.memory_space<vmem>>, %arg5: memref<8x8xbf16, #tpu.memory_space<vmem>>, %arg6: memref<2x24x8xbf16, #tpu.memory_space<vmem>>, %arg7: memref<4x8xf32, #tpu.memory_space<vmem>>, %arg8: memref<1x8x8xf32, #tpu.memory_space<vmem>>) attributes {dimension_semantics = [#tpu.dimension_semantics<parallel>], iteration_bounds = array<i64: 2>, scalar_prefetch = 0 : i64, scratch_operands = 0 : i64, tpu.core_type = #tpu.core_type<tc>, window_params = [{transform_indices = @transform_0, window_bounds = array<i64: 1, 8, 4>}, {transform_indices = @transform_1, window_bounds = array<i64: 1, 8, 4>}, {transform_indices = @transform_2, window_bounds = array<i64: 1, 4, 8>}, {pipeline_mode = #tpu.pipeline_mode<synchronous>, transform_indices = @transform_3, window_bounds = array<i64: 12, 8>}, {pipeline_mode = #tpu.pipeline_mode<synchronous>, transform_indices = @transform_4, window_bounds = array<i64: 8, 8>}, {pipeline_mode = #tpu.pipeline_mode<synchronous>, transform_indices = @transform_5, window_bounds = array<i64: 2, 24, 8>}, {pipeline_mode = #tpu.pipeline_mode<synchronous>, transform_indices = @transform_6, window_bounds = array<i64: 4, 8>}, {transform_indices = @transform_7, window_bounds = array<i64: 1, 8, 8>}]} {
    %c0 = arith.constant 0 : index
    %c0_0 = arith.constant 0 : index
    %c0_1 = arith.constant 0 : index
    %0 = vector.load %arg1[%c0, %c0_0, %c0_1] : memref<1x8x4xbf16, #tpu.memory_space<vmem>>, vector<1x8x4xbf16>
    %c0_2 = arith.constant 0 : index
    %c0_3 = arith.constant 0 : index
    %c0_4 = arith.constant 0 : index
    %1 = vector.load %arg2[%c0_2, %c0_3, %c0_4] : memref<1x8x4xbf16, #tpu.memory_space<vmem>>, vector<1x8x4xbf16>
    %c0_5 = arith.constant 0 : index
    %c0_6 = arith.constant 0 : index
    %c0_7 = arith.constant 0 : index
    %2 = vector.load %arg3[%c0_5, %c0_6, %c0_7] : memref<1x4x8xf32, #tpu.memory_space<vmem>>, vector<1x4x8xf32>
    %c0_8 = arith.constant 0 : index
    %c0_9 = arith.constant 0 : index
    %3 = vector.load %arg7[%c0_8, %c0_9] : memref<4x8xf32, #tpu.memory_space<vmem>>, vector<4x8xf32>
    %4 = vector.extract_strided_slice %3 {offsets = [0, 0], sizes = [1, 8], strides = [1, 1]} : vector<4x8xf32> to vector<1x8xf32>
    %5 = vector.extract_strided_slice %3 {offsets = [1, 0], sizes = [1, 8], strides = [1, 1]} : vector<4x8xf32> to vector<1x8xf32>
    %6 = vector.extract_strided_slice %3 {offsets = [2, 0], sizes = [1, 8], strides = [1, 1]} : vector<4x8xf32> to vector<1x8xf32>
    %7 = vector.extract_strided_slice %3 {offsets = [3, 0], sizes = [1, 8], strides = [1, 1]} : vector<4x8xf32> to vector<1x8xf32>
    %cst = arith.constant 0.000000e+00 : bf16
    %8 = vector.broadcast %cst : bf16 to vector<1x1x4xbf16>
    %9 = vector.extract_strided_slice %1 {offsets = [0, 0, 0], sizes = [1, 7, 4], strides = [1, 1, 1]} : vector<1x8x4xbf16> to vector<1x7x4xbf16>
    %10 = tpu.concatenate %8, %9 in 1 : vector<1x1x4xbf16>, vector<1x7x4xbf16> -> vector<1x8x4xbf16>
    %11 = tpu.concatenate %10, %0, %1 in 2 : vector<1x8x4xbf16>, vector<1x8x4xbf16>, vector<1x8x4xbf16> -> vector<1x8x12xbf16>
    %cst_10 = arith.constant 0.000000e+00 : bf16
    %12 = vector.broadcast %cst_10 : bf16 to vector<1x1x4xbf16>
    %13 = vector.extract_strided_slice %0 {offsets = [0, 1, 0], sizes = [1, 7, 4], strides = [1, 1, 1]} : vector<1x8x4xbf16> to vector<1x7x4xbf16>
    %14 = tpu.concatenate %13, %12 in 1 : vector<1x7x4xbf16>, vector<1x1x4xbf16> -> vector<1x8x4xbf16>
    %15 = tpu.concatenate %0, %1, %14 in 2 : vector<1x8x4xbf16>, vector<1x8x4xbf16>, vector<1x8x4xbf16> -> vector<1x8x12xbf16>
    %16 = tpu.concatenate %11, %15 in 0 : vector<1x8x12xbf16>, vector<1x8x12xbf16> -> vector<2x8x12xbf16>
    %c0_11 = arith.constant 0 : index
    %c0_12 = arith.constant 0 : index
    %17 = vector.load %arg4[%c0_11, %c0_12] : memref<12x8xbf16, #tpu.memory_space<vmem>>, vector<12x8xbf16>
    %18 = vector.shape_cast %16 : vector<2x8x12xbf16> to vector<16x12xbf16>
    %cst_13 = arith.constant dense<0.000000e+00> : vector<16x8xf32>
    %19 = tpu.matmul %18, %17, %cst_13 {dimension_numbers = #tpu.dot_dimension_numbers<[1], [0], [0], [1], [0, 0, 1, 1], [], []>} : vector<16x12xbf16>, vector<12x8xbf16>, vector<16x8xf32> -> vector<16x8xf32>
    %20 = vector.shape_cast %19 : vector<16x8xf32> to vector<2x8x8xf32>
    %21 = vector.shape_cast %4 : vector<1x8xf32> to vector<1x1x8xf32>
    %22 = vector.broadcast %21 : vector<1x1x8xf32> to vector<2x8x8xf32>
    %23 = arith.addf %20, %22 : vector<2x8x8xf32>
    %cst_14 = arith.constant 0.000000e+00 : f32
    %24 = vector.broadcast %cst_14 : f32 to vector<2x8x8xf32>
    %25 = arith.cmpf ogt, %23, %24 : vector<2x8x8xf32>
    %cst_15 = arith.constant 2.000000e-01 : f32
    %26 = vector.broadcast %cst_15 : f32 to vector<2x8x8xf32>
    %27 = arith.mulf %26, %23 : vector<2x8x8xf32>
    %28 = arith.select %25, %23, %27 : vector<2x8x8xi1>, vector<2x8x8xf32>
    %29 = vector.extract_strided_slice %28 {offsets = [0, 0, 0], sizes = [1, 8, 8], strides = [1, 1, 1]} : vector<2x8x8xf32> to vector<1x8x8xf32>
    %30 = vector.extract_strided_slice %28 {offsets = [1, 0, 0], sizes = [1, 8, 8], strides = [1, 1, 1]} : vector<2x8x8xf32> to vector<1x8x8xf32>
    %31 = arith.addf %29, %30 : vector<1x8x8xf32>
    %32 = vector.extract_strided_slice %2 {offsets = [0, 0, 0], sizes = [1, 1, 8], strides = [1, 1, 1]} : vector<1x4x8xf32> to vector<1x1x8xf32>
    %33 = vector.extract_strided_slice %2 {offsets = [0, 1, 0], sizes = [1, 1, 8], strides = [1, 1, 1]} : vector<1x4x8xf32> to vector<1x1x8xf32>
    %cst_16 = arith.constant dense<0.000000e+00> : vector<1x8xf32>
    %34 = vector.multi_reduction <add>, %31, %cst_16 [1] : vector<1x8x8xf32> to vector<1x8xf32>
    %35 = vector.shape_cast %34 : vector<1x8xf32> to vector<1x1x8xf32>
    %cst_17 = arith.constant 8.000000e+00 : f32
    %36 = vector.broadcast %cst_17 : f32 to vector<1x1x8xf32>
    %37 = arith.divf %35, %36 : vector<1x1x8xf32>
    %38 = arith.mulf %31, %31 : vector<1x8x8xf32>
    %cst_18 = arith.constant dense<0.000000e+00> : vector<1x8xf32>
    %39 = vector.multi_reduction <add>, %38, %cst_18 [1] : vector<1x8x8xf32> to vector<1x8xf32>
    %40 = vector.shape_cast %39 : vector<1x8xf32> to vector<1x1x8xf32>
    %cst_19 = arith.constant 8.000000e+00 : f32
    %41 = vector.broadcast %cst_19 : f32 to vector<1x1x8xf32>
    %42 = arith.divf %40, %41 : vector<1x1x8xf32>
    %43 = arith.mulf %37, %37 : vector<1x1x8xf32>
    %44 = arith.subf %42, %43 : vector<1x1x8xf32>
    %cst_20 = arith.constant 9.99999974E-6 : f32
    %45 = vector.broadcast %cst_20 : f32 to vector<1x1x8xf32>
    %46 = arith.addf %44, %45 : vector<1x1x8xf32>
    %47 = math.rsqrt %46 : vector<1x1x8xf32>
    %48 = arith.mulf %32, %47 : vector<1x1x8xf32>
    %49 = vector.broadcast %48 : vector<1x1x8xf32> to vector<1x8x8xf32>
    %50 = arith.mulf %31, %49 : vector<1x8x8xf32>
    %51 = arith.mulf %37, %48 : vector<1x1x8xf32>
    %52 = arith.subf %33, %51 : vector<1x1x8xf32>
    %53 = vector.broadcast %52 : vector<1x1x8xf32> to vector<1x8x8xf32>
    %54 = arith.addf %50, %53 : vector<1x8x8xf32>
    %c0_21 = arith.constant 0 : index
    %c0_22 = arith.constant 0 : index
    %55 = vector.load %arg5[%c0_21, %c0_22] : memref<8x8xbf16, #tpu.memory_space<vmem>>, vector<8x8xbf16>
    %56 = vector.shape_cast %54 : vector<1x8x8xf32> to vector<8x8xf32>
    %57 = arith.truncf %56 : vector<8x8xf32> to vector<8x8xbf16>
    %cst_23 = arith.constant dense<0.000000e+00> : vector<8x8xf32>
    %58 = tpu.matmul %57, %55, %cst_23 {dimension_numbers = #tpu.dot_dimension_numbers<[1], [0], [0], [1], [0, 0, 1, 1], [], []>} : vector<8x8xbf16>, vector<8x8xbf16>, vector<8x8xf32> -> vector<8x8xf32>
    %59 = vector.shape_cast %58 : vector<8x8xf32> to vector<1x8x8xf32>
    %60 = vector.shape_cast %5 : vector<1x8xf32> to vector<1x1x8xf32>
    %61 = vector.broadcast %60 : vector<1x1x8xf32> to vector<1x8x8xf32>
    %62 = arith.addf %59, %61 : vector<1x8x8xf32>
    %cst_24 = arith.constant 0.000000e+00 : f32
    %63 = vector.broadcast %cst_24 : f32 to vector<1x8x8xf32>
    %64 = arith.cmpf ogt, %54, %63 : vector<1x8x8xf32>
    %cst_25 = arith.constant 2.000000e-01 : f32
    %65 = vector.broadcast %cst_25 : f32 to vector<1x8x8xf32>
    %66 = arith.mulf %65, %54 : vector<1x8x8xf32>
    %67 = arith.select %64, %54, %66 : vector<1x8x8xi1>, vector<1x8x8xf32>
    %68 = vector.extract_strided_slice %2 {offsets = [0, 2, 0], sizes = [1, 1, 8], strides = [1, 1, 1]} : vector<1x4x8xf32> to vector<1x1x8xf32>
    %69 = vector.extract_strided_slice %2 {offsets = [0, 3, 0], sizes = [1, 1, 8], strides = [1, 1, 1]} : vector<1x4x8xf32> to vector<1x1x8xf32>
    %cst_26 = arith.constant dense<0.000000e+00> : vector<1x8xf32>
    %70 = vector.multi_reduction <add>, %67, %cst_26 [1] : vector<1x8x8xf32> to vector<1x8xf32>
    %71 = vector.shape_cast %70 : vector<1x8xf32> to vector<1x1x8xf32>
    %cst_27 = arith.constant 8.000000e+00 : f32
    %72 = vector.broadcast %cst_27 : f32 to vector<1x1x8xf32>
    %73 = arith.divf %71, %72 : vector<1x1x8xf32>
    %74 = arith.mulf %67, %67 : vector<1x8x8xf32>
    %cst_28 = arith.constant dense<0.000000e+00> : vector<1x8xf32>
    %75 = vector.multi_reduction <add>, %74, %cst_28 [1] : vector<1x8x8xf32> to vector<1x8xf32>
    %76 = vector.shape_cast %75 : vector<1x8xf32> to vector<1x1x8xf32>
    %cst_29 = arith.constant 8.000000e+00 : f32
    %77 = vector.broadcast %cst_29 : f32 to vector<1x1x8xf32>
    %78 = arith.divf %76, %77 : vector<1x1x8xf32>
    %79 = arith.mulf %73, %73 : vector<1x1x8xf32>
    %80 = arith.subf %78, %79 : vector<1x1x8xf32>
    %cst_30 = arith.constant 9.99999974E-6 : f32
    %81 = vector.broadcast %cst_30 : f32 to vector<1x1x8xf32>
    %82 = arith.addf %80, %81 : vector<1x1x8xf32>
    %83 = math.rsqrt %82 : vector<1x1x8xf32>
    %84 = arith.mulf %68, %83 : vector<1x1x8xf32>
    %85 = vector.broadcast %84 : vector<1x1x8xf32> to vector<1x8x8xf32>
    %86 = arith.mulf %67, %85 : vector<1x8x8xf32>
    %87 = arith.mulf %73, %84 : vector<1x1x8xf32>
    %88 = arith.subf %69, %87 : vector<1x1x8xf32>
    %89 = vector.broadcast %88 : vector<1x1x8xf32> to vector<1x8x8xf32>
    %90 = arith.addf %86, %89 : vector<1x8x8xf32>
    %c0_31 = arith.constant 0 : index
    %c0_32 = arith.constant 0 : index
    %c0_33 = arith.constant 0 : index
    %91 = vector.load %arg6[%c0_31, %c0_32, %c0_33] : memref<2x24x8xbf16, #tpu.memory_space<vmem>>, vector<1x24x8xbf16>
    %92 = vector.shape_cast %91 : vector<1x24x8xbf16> to vector<24x8xbf16>
    %93 = arith.truncf %90 : vector<1x8x8xf32> to vector<1x8x8xbf16>
    %cst_34 = arith.constant 0.000000e+00 : bf16
    %94 = vector.broadcast %cst_34 : bf16 to vector<1x1x8xbf16>
    %95 = vector.extract_strided_slice %93 {offsets = [0, 0, 0], sizes = [1, 7, 8], strides = [1, 1, 1]} : vector<1x8x8xbf16> to vector<1x7x8xbf16>
    %96 = tpu.concatenate %94, %95 in 1 : vector<1x1x8xbf16>, vector<1x7x8xbf16> -> vector<1x8x8xbf16>
    %cst_35 = arith.constant 0.000000e+00 : bf16
    %97 = vector.broadcast %cst_35 : bf16 to vector<1x1x8xbf16>
    %98 = vector.extract_strided_slice %93 {offsets = [0, 1, 0], sizes = [1, 7, 8], strides = [1, 1, 1]} : vector<1x8x8xbf16> to vector<1x7x8xbf16>
    %99 = tpu.concatenate %98, %97 in 1 : vector<1x7x8xbf16>, vector<1x1x8xbf16> -> vector<1x8x8xbf16>
    %100 = tpu.concatenate %96, %93, %99 in 2 : vector<1x8x8xbf16>, vector<1x8x8xbf16>, vector<1x8x8xbf16> -> vector<1x8x24xbf16>
    %101 = vector.shape_cast %100 : vector<1x8x24xbf16> to vector<8x24xbf16>
    %cst_36 = arith.constant dense<0.000000e+00> : vector<8x8xf32>
    %102 = tpu.matmul %101, %92, %cst_36 {dimension_numbers = #tpu.dot_dimension_numbers<[1], [0], [0], [1], [0, 0, 1, 1], [], []>} : vector<8x24xbf16>, vector<24x8xbf16>, vector<8x8xf32> -> vector<8x8xf32>
    %103 = vector.shape_cast %102 : vector<8x8xf32> to vector<1x8x8xf32>
    %104 = vector.shape_cast %6 : vector<1x8xf32> to vector<1x1x8xf32>
    %105 = vector.broadcast %104 : vector<1x1x8xf32> to vector<1x8x8xf32>
    %106 = arith.addf %103, %105 : vector<1x8x8xf32>
    %cst_37 = arith.constant 0.000000e+00 : f32
    %107 = vector.broadcast %cst_37 : f32 to vector<1x8x8xf32>
    %108 = arith.cmpf ogt, %106, %107 : vector<1x8x8xf32>
    %cst_38 = arith.constant 2.000000e-01 : f32
    %109 = vector.broadcast %cst_38 : f32 to vector<1x8x8xf32>
    %110 = arith.mulf %109, %106 : vector<1x8x8xf32>
    %111 = arith.select %108, %106, %110 : vector<1x8x8xi1>, vector<1x8x8xf32>
    %c1 = arith.constant 1 : index
    %c0_39 = arith.constant 0 : index
    %c0_40 = arith.constant 0 : index
    %112 = vector.load %arg6[%c1, %c0_39, %c0_40] : memref<2x24x8xbf16, #tpu.memory_space<vmem>>, vector<1x24x8xbf16>
    %113 = vector.shape_cast %112 : vector<1x24x8xbf16> to vector<24x8xbf16>
    %114 = arith.truncf %111 : vector<1x8x8xf32> to vector<1x8x8xbf16>
    %cst_41 = arith.constant 0.000000e+00 : bf16
    %115 = vector.broadcast %cst_41 : bf16 to vector<1x1x8xbf16>
    %116 = vector.extract_strided_slice %114 {offsets = [0, 0, 0], sizes = [1, 7, 8], strides = [1, 1, 1]} : vector<1x8x8xbf16> to vector<1x7x8xbf16>
    %117 = tpu.concatenate %115, %116 in 1 : vector<1x1x8xbf16>, vector<1x7x8xbf16> -> vector<1x8x8xbf16>
    %cst_42 = arith.constant 0.000000e+00 : bf16
    %118 = vector.broadcast %cst_42 : bf16 to vector<1x1x8xbf16>
    %119 = vector.extract_strided_slice %114 {offsets = [0, 1, 0], sizes = [1, 7, 8], strides = [1, 1, 1]} : vector<1x8x8xbf16> to vector<1x7x8xbf16>
    %120 = tpu.concatenate %119, %118 in 1 : vector<1x7x8xbf16>, vector<1x1x8xbf16> -> vector<1x8x8xbf16>
    %121 = tpu.concatenate %117, %114, %120 in 2 : vector<1x8x8xbf16>, vector<1x8x8xbf16>, vector<1x8x8xbf16> -> vector<1x8x24xbf16>
    %122 = vector.shape_cast %121 : vector<1x8x24xbf16> to vector<8x24xbf16>
    %cst_43 = arith.constant dense<0.000000e+00> : vector<8x8xf32>
    %123 = tpu.matmul %122, %113, %cst_43 {dimension_numbers = #tpu.dot_dimension_numbers<[1], [0], [0], [1], [0, 0, 1, 1], [], []>} : vector<8x24xbf16>, vector<24x8xbf16>, vector<8x8xf32> -> vector<8x8xf32>
    %124 = vector.shape_cast %123 : vector<8x8xf32> to vector<1x8x8xf32>
    %125 = vector.shape_cast %7 : vector<1x8xf32> to vector<1x1x8xf32>
    %126 = vector.broadcast %125 : vector<1x1x8xf32> to vector<1x8x8xf32>
    %127 = arith.addf %124, %126 : vector<1x8x8xf32>
    %128 = arith.addf %127, %62 : vector<1x8x8xf32>
    %129 = tpu.transpose %128, [0, 2, 1] : vector<1x8x8xf32> -> vector<1x8x8xf32>
    %c0_44 = arith.constant 0 : index
    %c0_45 = arith.constant 0 : index
    %c0_46 = arith.constant 0 : index
    %130 = vector.load %arg8[%c0_44, %c0_45, %c0_46] : memref<1x8x8xf32, #tpu.memory_space<vmem>>, vector<1x8x8xf32>
    tpu.vector_store %arg8[%c0_44, %c0_45, %c0_46], %129 {strides = array<i32>} : memref<1x8x8xf32, #tpu.memory_space<vmem>>, vector<1x8x8xf32>,
    return
  }
  func.func @transform_0(%arg0: i32) -> (i32, i32, i32) {
    %c0_i32 = arith.constant 0 : i32
    %c0_i32_0 = arith.constant 0 : i32
    %c0_i32_1 = arith.constant 0 : i32
    return %arg0, %c0_i32, %c0_i32_0 : i32, i32, i32
  }
  func.func @transform_1(%arg0: i32) -> (i32, i32, i32) {
    %c0_i32 = arith.constant 0 : i32
    %c0_i32_0 = arith.constant 0 : i32
    %c0_i32_1 = arith.constant 0 : i32
    return %arg0, %c0_i32, %c0_i32_0 : i32, i32, i32
  }
  func.func @transform_2(%arg0: i32) -> (i32, i32, i32) {
    %c0_i32 = arith.constant 0 : i32
    %c0_i32_0 = arith.constant 0 : i32
    %c0_i32_1 = arith.constant 0 : i32
    return %arg0, %c0_i32, %c0_i32_0 : i32, i32, i32
  }
  func.func @transform_3(%arg0: i32) -> (i32, i32) {
    %c0_i32 = arith.constant 0 : i32
    %c0_i32_0 = arith.constant 0 : i32
    %c0_i32_1 = arith.constant 0 : i32
    return %c0_i32, %c0_i32_0 : i32, i32
  }
  func.func @transform_4(%arg0: i32) -> (i32, i32) {
    %c0_i32 = arith.constant 0 : i32
    %c0_i32_0 = arith.constant 0 : i32
    %c0_i32_1 = arith.constant 0 : i32
    return %c0_i32, %c0_i32_0 : i32, i32
  }
  func.func @transform_5(%arg0: i32) -> (i32, i32, i32) {
    %c0_i32 = arith.constant 0 : i32
    %c0_i32_0 = arith.constant 0 : i32
    %c0_i32_1 = arith.constant 0 : i32
    %c0_i32_2 = arith.constant 0 : i32
    return %c0_i32, %c0_i32_0, %c0_i32_1 : i32, i32, i32
  }
  func.func @transform_6(%arg0: i32) -> (i32, i32) {
    %c0_i32 = arith.constant 0 : i32
    %c0_i32_0 = arith.constant 0 : i32
    %c0_i32_1 = arith.constant 0 : i32
    return %c0_i32, %c0_i32_0 : i32, i32
  }
  func.func @transform_7(%arg0: i32) -> (i32, i32, i32) {
    %c0_i32 = arith.constant 0 : i32
    %c0_i32_0 = arith.constant 0 : i32
    %c0_i32_1 = arith.constant 0 : i32
    return %arg0, %c0_i32, %c0_i32_0 : i32, i32, i32
  }
}

</mosaic_0001>

<llo_original>
// kernel: tpu_custom_call.1
$region0: #{tpu_custom_call.1}
  #allocation0 [shape = 'u32[]', space=smem, size = 0x4, offset = 0x4, fixed_abs, tag = 'smem constant byte address 0x4 - core index']
  #allocation1 [shape = 'u32[72,128]{1,0:T(1,128)}', space=vmem, size = 0x9000, scoped, tag = 'internal scratch']
  %s0 = inlined_call_operand.vmem [shape: bf16[2,8,4], index: 0, kind: input, shape index: {}]
  %s1 = inlined_call_operand.vmem [shape: bf16[2,8,4], index: 1, kind: input, shape index: {}]
  %s2 = inlined_call_operand.vmem [shape: f32[2,4,8], index: 2, kind: input, shape index: {}]
  %s3 = inlined_call_operand.vmem [shape: bf16[12,8], index: 3, kind: input, shape index: {}]
  %s4 = inlined_call_operand.vmem [shape: bf16[8,8], index: 4, kind: input, shape index: {}]
  %s5 = inlined_call_operand.vmem [shape: bf16[2,24,8], index: 5, kind: input, shape index: {}]
  %s6 = inlined_call_operand.vmem [shape: f32[4,8], index: 6, kind: input, shape index: {}]
  %s7 = inlined_call_operand.hbm [shape: f32[2,8,8], index: 7, kind: output, shape index: {}]
  %s8 = sld [smem:[#allocation0]]
  $region61: #{tpu_custom_call.1} parent=0
    _
  %s10 = ssub.s32 1, %s8
  %s11 = scalar_select 0, %s10, %s8
  $region1: #{tpu_custom_call.1} parent=0
    #allocation2 [shape = 'u8[8192]{0}', space=vmem, size = 0x2000, scoped, tag = 'output window, operand 0']
    #allocation3 [shape = 's32[2]{0}', space=sflag, size = 0x8, scoped, tag = 'scoped memory for tpu_custom_call.1']
    %12 = vsyncpa [#allocation3], 0
    %s13 = scalar_lea.sflag [#allocation3], 1
    %14 = vsyncpa %s13, 0
    loop: start=0, step=1, limit=4
    $region2: #{tpu_custom_call.1} parent=1 // loop_pre_header
      _
    $region3: #{tpu_custom_call.1} parent=1 // loop_header
      %s16 = sphi 0, %s20
      %p17 = scmp.ge.s32.totalorder %s16, 4
      %s26 = sphi 0, %s28
      %s29 = sphi 0, %s26
      %s30 = sphi 0, %s29
      %s46 = sphi 0, %s30
      %s52 = sphi 0, %s54
      %s55 = sphi 0, %s52
      %s56 = sphi 0, %s55
      %s72 = sphi 0, %s56
      %s78 = sphi 0, %s80
      %s81 = sphi 0, %s78
      %s82 = sphi 0, %s81
      %s98 = sphi 0, %s82
      %s102 = sphi 0, %s102
      %s104 = sphi 0, %s102
      %s105 = sphi 0, %s104
      %s119 = sphi 0, %s105
      %s123 = sphi 0, %s123
      %s125 = sphi 0, %s123
      %s126 = sphi 0, %s125
      %s140 = sphi 0, %s126
      %s144 = sphi 0, %s144
      %s146 = sphi 0, %s144
      %s147 = sphi 0, %s146
      %s161 = sphi 0, %s147
      %s165 = sphi 0, %s165
      %s167 = sphi 0, %s165
      %s168 = sphi 0, %s167
      %s182 = sphi 0, %s168
      %s188 = sphi 0, %s190
      %s191 = sphi 0, %s188
      %s192 = sphi 0, %s191
      %s208 = sphi 0, %s192
    $region4: #{tpu_custom_call.1} parent=1 // loop_header_branch
      %19 = sbr.rel (%p17) target = $region8
    $region5: #{tpu_custom_call.1} parent=1 // loop_body
      %s21 = ssub.s32 %s16, 1
      %s22 = ssub.s32 %s16, 2
      %s23 = sadd.s32 %s16, 1
      %s24 = ssub.s32 %s16, %s23
      %p25 = scmp.eq.s32.totalorder %s24, 0
      %s27 = sadd.s32 %s26, 1
      %s28 = scalar_select %p25, %s26, %s27
      %p31 = pneg %p25
      %p32 = scmp.eq.s32.totalorder %s16, 1
      %p33 = por %p31, %p32
      %p34 = scmp.ne.s32.totalorder %s26, %s29
      %p35 = scmp.eq.s32.totalorder %s16, 0
      %p36 = por %p34, %p35
      %p37 = scmp.ne.s32.totalorder %s26, %s29
      %p38 = scmp.eq.s32.totalorder %s21, 1
      %p39 = por %p37, %p38
      %p40 = scmp.ne.s32.totalorder %s29, %s30
      %p41 = scmp.eq.s32.totalorder %s21, 0
      %p42 = por %p40, %p41
      %p43 = scmp.ne.s32.totalorder %s29, %s30
      %p44 = scmp.eq.s32.totalorder %s22, 1
      %p45 = por %p43, %p44
      %p47 = scmp.ne.s32.totalorder %s30, %s46
      %p48 = scmp.eq.s32.totalorder %s22, 0
      %p49 = por %p47, %p48
      %s50 = ssub.s32 %s16, %s23
      %p51 = scmp.eq.s32.totalorder %s50, 0
      %s53 = sadd.s32 %s52, 1
      %s54 = scalar_select %p51, %s52, %s53
      %p57 = pneg %p51
      %p58 = scmp.eq.s32.totalorder %s16, 1
      %p59 = por %p57, %p58
      %p60 = scmp.ne.s32.totalorder %s52, %s55
      %p61 = scmp.eq.s32.totalorder %s16, 0
      %p62 = por %p60, %p61
      %p63 = scmp.ne.s32.totalorder %s52, %s55
      %p64 = scmp.eq.s32.totalorder %s21, 1
      %p65 = por %p63, %p64
      %p66 = scmp.ne.s32.totalorder %s55, %s56
      %p67 = scmp.eq.s32.totalorder %s21, 0
      %p68 = por %p66, %p67
      %p69 = scmp.ne.s32.totalorder %s55, %s56
      %p70 = scmp.eq.s32.totalorder %s22, 1
      %p71 = por %p69, %p70
      %p73 = scmp.ne.s32.totalorder %s56, %s72
      %p74 = scmp.eq.s32.totalorder %s22, 0
      %p75 = por %p73, %p74
      %s76 = ssub.s32 %s16, %s23
      %p77 = scmp.eq.s32.totalorder %s76, 0
      %s79 = sadd.s32 %s78, 1
      %s80 = scalar_select %p77, %s78, %s79
      %p83 = pneg %p77
      %p84 = scmp.eq.s32.totalorder %s16, 1
      %p85 = por %p83, %p84
      %p86 = scmp.ne.s32.totalorder %s78, %s81
      %p87 = scmp.eq.s32.totalorder %s16, 0
      %p88 = por %p86, %p87
      %p89 = scmp.ne.s32.totalorder %s78, %s81
      %p90 = scmp.eq.s32.totalorder %s21, 1
      %p91 = por %p89, %p90
      %p92 = scmp.ne.s32.totalorder %s81, %s82
      %p93 = scmp.eq.s32.totalorder %s21, 0
      %p94 = por %p92, %p93
      %p95 = scmp.ne.s32.totalorder %s81, %s82
      %p96 = scmp.eq.s32.totalorder %s22, 1
      %p97 = por %p95, %p96
      %p99 = scmp.ne.s32.totalorder %s82, %s98
      %p100 = scmp.eq.s32.totalorder %s22, 0
      %p101 = por %p99, %p100
      %s103 = sadd.s32 %s102, 1
      %p106 = scmp.eq.s32.totalorder %s16, 1
      %p107 = scmp.ne.s32.totalorder %s102, %s104
      %p108 = scmp.eq.s32.totalorder %s16, 0
      %p109 = por %p107, %p108
      %p110 = scmp.ne.s32.totalorder %s102, %s104
      %p111 = scmp.eq.s32.totalorder %s21, 1
      %p112 = por %p110, %p111
      %p113 = scmp.ne.s32.totalorder %s104, %s105
      %p114 = scmp.eq.s32.totalorder %s21, 0
      %p115 = por %p113, %p114
      %p116 = scmp.ne.s32.totalorder %s104, %s105
      %p117 = scmp.eq.s32.totalorder %s22, 1
      %p118 = por %p116, %p117
      %p120 = scmp.ne.s32.totalorder %s105, %s119
      %p121 = scmp.eq.s32.totalorder %s22, 0
      %p122 = por %p120, %p121
      %s124 = sadd.s32 %s123, 1
      %p127 = scmp.eq.s32.totalorder %s16, 1
      %p128 = scmp.ne.s32.totalorder %s123, %s125
      %p129 = scmp.eq.s32.totalorder %s16, 0
      %p130 = por %p128, %p129
      %p131 = scmp.ne.s32.totalorder %s123, %s125
      %p132 = scmp.eq.s32.totalorder %s21, 1
      %p133 = por %p131, %p132
      %p134 = scmp.ne.s32.totalorder %s125, %s126
      %p135 = scmp.eq.s32.totalorder %s21, 0
      %p136 = por %p134, %p135
      %p137 = scmp.ne.s32.totalorder %s125, %s126
      %p138 = scmp.eq.s32.totalorder %s22, 1
      %p139 = por %p137, %p138
      %p141 = scmp.ne.s32.totalorder %s126, %s140
      %p142 = scmp.eq.s32.totalorder %s22, 0
      %p143 = por %p141, %p142
      %s145 = sadd.s32 %s144, 1
      %p148 = scmp.eq.s32.totalorder %s16, 1
      %p149 = scmp.ne.s32.totalorder %s144, %s146
      %p150 = scmp.eq.s32.totalorder %s16, 0
      %p151 = por %p149, %p150
      %p152 = scmp.ne.s32.totalorder %s144, %s146
      %p153 = scmp.eq.s32.totalorder %s21, 1
      %p154 = por %p152, %p153
      %p155 = scmp.ne.s32.totalorder %s146, %s147
      %p156 = scmp.eq.s32.totalorder %s21, 0
      %p157 = por %p155, %p156
      %p158 = scmp.ne.s32.totalorder %s146, %s147
      %p159 = scmp.eq.s32.totalorder %s22, 1
      %p160 = por %p158, %p159
      %p162 = scmp.ne.s32.totalorder %s147, %s161
      %p163 = scmp.eq.s32.totalorder %s22, 0
      %p164 = por %p162, %p163
      %s166 = sadd.s32 %s165, 1
      %p169 = scmp.eq.s32.totalorder %s16, 1
      %p170 = scmp.ne.s32.totalorder %s165, %s167
      %p171 = scmp.eq.s32.totalorder %s16, 0
      %p172 = por %p170, %p171
      %p173 = scmp.ne.s32.totalorder %s165, %s167
      %p174 = scmp.eq.s32.totalorder %s21, 1
      %p175 = por %p173, %p174
      %p176 = scmp.ne.s32.totalorder %s167, %s168
      %p177 = scmp.eq.s32.totalorder %s21, 0
      %p178 = por %p176, %p177
      %p179 = scmp.ne.s32.totalorder %s167, %s168
      %p180 = scmp.eq.s32.totalorder %s22, 1
      %p181 = por %p179, %p180
      %p183 = scmp.ne.s32.totalorder %s168, %s182
      %p184 = scmp.eq.s32.totalorder %s22, 0
      %p185 = por %p183, %p184
      %s186 = ssub.s32 %s16, %s23
      %p187 = scmp.eq.s32.totalorder %s186, 0
      %s189 = sadd.s32 %s188, 1
      %s190 = scalar_select %p187, %s188, %s189
      %p193 = pneg %p187
      %p194 = scmp.eq.s32.totalorder %s16, 1
      %p195 = por %p193, %p194
      %p196 = scmp.ne.s32.totalorder %s188, %s191
      %p197 = scmp.eq.s32.totalorder %s16, 0
      %p198 = por %p196, %p197
      %p199 = scmp.ne.s32.totalorder %s188, %s191
      %p200 = scmp.eq.s32.totalorder %s21, 1
      %p201 = por %p199, %p200
      %p202 = scmp.ne.s32.totalorder %s191, %s192
      %p203 = scmp.eq.s32.totalorder %s21, 0
      %p204 = por %p202, %p203
      %p205 = scmp.ne.s32.totalorder %s191, %s192
      %p206 = scmp.eq.s32.totalorder %s22, 1
      %p207 = por %p205, %p206
      %p209 = scmp.ne.s32.totalorder %s192, %s208
      %p210 = scmp.eq.s32.totalorder %s22, 0
      %p211 = por %p209, %p210
      %p212 = scmp.le.s32.totalorder 1, %s16
      %p213 = scmp.lt.s32.totalorder %s16, 3
      %p214 = pnand %p212, %p213
      %p215 = pneg %p214
      // Predicated region
      $region9: #{tpu_custom_call.1} parent=5 // pred_check
        _
      $region10: #{tpu_custom_call.1} parent=5 // pred_check_branch
        %217 = sbr.rel (%p214) target = $region12
      $region11: #{tpu_custom_call.1} parent=5 // pred_region
        %s218 = ssub.s32 %s16, 1
        // Predicated region
        $region13: #{tpu_custom_call.1} parent=11 // pred_check
          %p219 = pneg %p115
        $region14: #{tpu_custom_call.1} parent=11 // pred_check_branch
          %221 = sbr.rel (%p219) target = $region16
        $region15: #{tpu_custom_call.1} parent=11 // pred_region
          _
        $region16: #{tpu_custom_call.1} parent=11 // pred_fallthru
          _
        // Predicated region
        $region17: #{tpu_custom_call.1} parent=11 // pred_check
          %p222 = pneg %p136
        $region18: #{tpu_custom_call.1} parent=11 // pred_check_branch
          %224 = sbr.rel (%p222) target = $region20
        $region19: #{tpu_custom_call.1} parent=11 // pred_region
          _
        $region20: #{tpu_custom_call.1} parent=11 // pred_fallthru
          _
        // Predicated region
        $region21: #{tpu_custom_call.1} parent=11 // pred_check
          %p225 = pneg %p157
        $region22: #{tpu_custom_call.1} parent=11 // pred_check_branch
          %227 = sbr.rel (%p225) target = $region24
        $region23: #{tpu_custom_call.1} parent=11 // pred_region
          _
        $region24: #{tpu_custom_call.1} parent=11 // pred_fallthru
          _
        // Predicated region
        $region25: #{tpu_custom_call.1} parent=11 // pred_check
          %p228 = pneg %p178
        $region26: #{tpu_custom_call.1} parent=11 // pred_check_branch
          %230 = sbr.rel (%p228) target = $region28
        $region27: #{tpu_custom_call.1} parent=11 // pred_region
          _
        $region28: #{tpu_custom_call.1} parent=11 // pred_fallthru
          _
      $region12: #{tpu_custom_call.1} parent=5 // pred_fallthru
        _
      %p231 = scmp.lt.s32.totalorder %s16, 2
      // Predicated region
      $region29: #{tpu_custom_call.1} parent=5 // pred_check
        %p232 = pneg %p231
      $region30: #{tpu_custom_call.1} parent=5 // pred_check_branch
        %234 = sbr.rel (%p232) target = $region32
      $region31: #{tpu_custom_call.1} parent=5 // pred_region
        // Predicated region
        $region33: #{tpu_custom_call.1} parent=31 // pred_check
          %p235 = pneg %p36
        $region34: #{tpu_custom_call.1} parent=31 // pred_check_branch
          %237 = sbr.rel (%p235) target = $region36
        $region35: #{tpu_custom_call.1} parent=31 // pred_region
          %p238 = scmp.lt.s32.totalorder %s16, 1
          %s239 = scalar_select %p238, %s16, 1
          %s240 = smul.addr %s239, 4
          %s241 = scalar_lea.vmem %s0, %s240
        $region36: #{tpu_custom_call.1} parent=31 // pred_fallthru
          _
        // Predicated region
        $region37: #{tpu_custom_call.1} parent=31 // pred_check
          %p242 = pneg %p62
        $region38: #{tpu_custom_call.1} parent=31 // pred_check_branch
          %244 = sbr.rel (%p242) target = $region40
        $region39: #{tpu_custom_call.1} parent=31 // pred_region
          %p245 = scmp.lt.s32.totalorder %s16, 1
          %s246 = scalar_select %p245, %s16, 1
          %s247 = smul.addr %s246, 4
          %s248 = scalar_lea.vmem %s1, %s247
        $region40: #{tpu_custom_call.1} parent=31 // pred_fallthru
          _
        // Predicated region
        $region41: #{tpu_custom_call.1} parent=31 // pred_check
          %p249 = pneg %p88
        $region42: #{tpu_custom_call.1} parent=31 // pred_check_branch
          %251 = sbr.rel (%p249) target = $region44
        $region43: #{tpu_custom_call.1} parent=31 // pred_region
          %p252 = scmp.lt.s32.totalorder %s16, 1
          %s253 = scalar_select %p252, %s16, 1
          %s254 = smul.addr %s253, 4
          %s255 = scalar_lea.vmem %s2, %s254
        $region44: #{tpu_custom_call.1} parent=31 // pred_fallthru
          _
      $region32: #{tpu_custom_call.1} parent=5 // pred_fallthru
        _
      %p256 = scmp.le.s32.totalorder 1, %s16
      %p257 = scmp.lt.s32.totalorder %s16, 3
      %p258 = pnand %p256, %p257
      %p259 = pneg %p258
      // Predicated region
      $region45: #{tpu_custom_call.1} parent=5 // pred_check
        _
      $region46: #{tpu_custom_call.1} parent=5 // pred_check_branch
        %261 = sbr.rel (%p258) target = $region48
      $region47: #{tpu_custom_call.1} parent=5 // pred_region
        %s262 = ssub.s32 %s16, 1
        %p263 = scmp.lt.s32.totalorder %s21, 1
        %s264 = scalar_select %p263, %s21, 1
        %s265 = smul.addr %s264, 4
        %s266 = scalar_lea.vmem %s0, %s265
        %p267 = pneg %p42
        %p268 = pneg %p39
        %p269 = scmp.lt.s32.totalorder %s21, 1
        %s270 = scalar_select %p269, %s21, 1
        %s271 = smul.addr %s270, 4
        %s272 = scalar_lea.vmem %s1, %s271
        %p273 = pneg %p68
        %p274 = pneg %p65
        %p275 = scmp.lt.s32.totalorder %s21, 1
        %s276 = scalar_select %p275, %s21, 1
        %s277 = smul.addr %s276, 4
        %s278 = scalar_lea.vmem %s2, %s277
        %p279 = pneg %p94
        %p280 = pneg %p91
        %p281 = pneg %p115
        %p282 = pneg %p112
        %p283 = pneg %p136
        %p284 = pneg %p133
        %p285 = pneg %p157
        %p286 = pneg %p154
        %p287 = pneg %p178
        %p288 = pneg %p175
        %p289 = pneg %p204
        %p290 = pneg %p201
        %s291 = sand.u32 %s191, 1
        %s292 = scalar_lea.sflag [#allocation3], %s291
        %s293 = sand.u32 %s191, 1
        %s294 = smul.addr %s293, 8
        %s295 = scalar_lea.vmem [#allocation2], %s294
        %p296 = scmp.lt.s32.totalorder %s21, 1
        %s297 = scalar_select %p296, %s21, 1
        %s298 = smul.addr %s297, 4
        %s299 = scalar_lea.vmem %s0, %s298
        %p300 = scmp.lt.s32.totalorder %s21, 1
        %s301 = scalar_select %p300, %s21, 1
        %s302 = smul.addr %s301, 4
        %s303 = scalar_lea.vmem %s1, %s302
        %p304 = scmp.lt.s32.totalorder %s21, 1
        %s305 = scalar_select %p304, %s21, 1
        %s306 = smul.addr %s305, 4
        %s307 = scalar_lea.vmem %s2, %s306
        %v309 = vld [vmem:[%s299] sm:$0xf]
        %v310 = vld [vmem:[%s303] sm:$0xf]
        %v311 = vld [vmem:[%s307] sm:$0xf]
        %v312 = vld [vmem:[%s6] sm:$0xf]
        %v314 = vunpack.c.l.b16 %v310
        %v315 = vpack.c.b16 %v314, %v314
        %v317 = vshrl.u32 %v315, 16
        %v319 = vrot.slane %v317, 7
        %v320 = vshll.u32 %v315, 16
        %v322 = vor.u32 %v319, %v320
        %vm324 = vcmask 1040384
        %vm325 = vsmask.f32 256
        %vm326 = vmand %vm324, %vm325
        %v327 = vsel %vm326, 0, %v322
        %v329 = vunpack.c.l.b16 %v309
        %v330 = vpack.c.b16 %v329, %v329
        %331 = vrot.lane.b32.xlu0 %v330, 4
        %v332 = vpop.permute.xlu0 %331
        %333 = vrot.lane.b32.xlu0 %v315, 8
        %v334 = vpop.permute.xlu0 %333
        %vm335 = vcmask 31744
        %v338 = vsel %vm335, %v327, %v332
        %vm339 = vcmask 64512
        %v341 = vsel %vm339, %v338, %v334
        %v343 = vshrl.u32 %v330, 16
        %v345 = vshll.u32 %v330, 16
        %v347 = vrot.slane %v345, 1
        %v348 = vor.u32 %v343, %v347
        %vm350 = vcmask 1043456
        %vm351 = vsmask.f32 3328
        %vm352 = vmand %vm350, %vm351
        %v353 = vsel %vm352, %v348, 0
        %354 = vrot.lane.b32.xlu0 %v315, 4
        %v355 = vpop.permute.xlu0 %354
        %357 = vrot.lane.b32.xlu0 %v353, 8
        %v358 = vpop.permute.xlu0 %357
        %v361 = vsel %vm335, %v309, %v355
        %v363 = vsel %vm339, %v361, %v358
        %v364 = vld [vmem:[%s3] sm:$0xf]
        %v365 = vld [vmem:[%s3 + $0x4] sm:$0x3]
        %v368 = vunpack.c.l.b16 %v341
        %v369 = vunpack.c.l.b16 %v363
        %v370 = vpack.c.b16 %v369, %v368
        %v373 = vunpack.c.l.b16 %v364
        %v374 = vunpack.c.l.b16 %v365
        %v375 = vpack.c.b16 %v374, %v373
        %vm376 = vcmask 97280
        %v378 = vsel %vm376, %v370, 0
        %vm380 = vcmask 1045504
        %v382 = vsel %vm380, %v375, 0
        %384 = vmatpush.bf16.msra.mxu0 0
        %385 = vmatpush.bf16.msra.mxu0 0
        %386 = vmatpush.bf16.msra.mxu0 0
        %387 = vmatpush.bf16.msra.mxu0 0
        %388 = vmatpush.bf16.msra.mxu0 0
        %389 = vmatpush.bf16.msra.mxu0 0
        %390 = vmatpush.bf16.msra.mxu0 0
        %391 = vmatpush.bf16.msra.mxu0 %v382
        %392 = vmatmul.bf16.gmra.mxu0 %v378
        %v393 = vpop.f32.mrf.mxu0
        %v394 = vadd.f32 0.0, %v393
        %v395 = vpop.f32.mrf.mxu0
        %v396 = vadd.f32 0.0, %v395
        %397 = vdwg.mxu0
        %v398 = vperm.slane %v312, 0
        %v399 = vadd.f32 %v394, %v398
        %v400 = vadd.f32 %v396, %v398
        %vm401 = vcmp.gt.f32.partialorder %v399, 0.0
        %vm402 = vcmp.gt.f32.partialorder %v400, 0.0
        %v403 = vmul.f32 %v399, 0.2
        %v404 = vmul.f32 %v400, 0.2
        %v405 = vsel %vm401, %v399, %v403
        %v406 = vsel %vm402, %v400, %v404
        %v407 = vadd.f32 %v405, %v406
        %v408 = vsel %vm339, %v407, 0.0
        %v409 = vrot.slane %v408, 4
        %v410 = vadd.f32 %v408, %v409
        %v411 = vrot.slane %v410, 2
        %v412 = vadd.f32 %v410, %v411
        %v413 = vrot.slane %v412, 1
        %v414 = vadd.f32 %v412, %v413
        %v415 = vrcp.pop 8.0
        %v416 = vmul.f32 8.0, %v415
        %v417 = vsub.f32 1.0, %v416
        %v418 = vmul.f32 %v415, %v417
        %v419 = vadd.f32 %v415, %v418
        %vm420 = vweird.f32 %v415
        %v421 = vsel %vm420, %v415, %v419
        %v422 = vmul.f32 %v414, %v421
        %v423 = vmul.f32 %v407, %v407
        %v424 = vsel %vm339, %v423, 0.0
        %v425 = vrot.slane %v424, 4
        %v426 = vadd.f32 %v424, %v425
        %v427 = vrot.slane %v426, 2
        %v428 = vadd.f32 %v426, %v427
        %v429 = vrot.slane %v428, 1
        %v430 = vadd.f32 %v428, %v429
        %v431 = vmul.f32 %v430, %v421
        %v432 = vmul.f32 %v422, %v422
        %v433 = vsub.f32 %v431, %v432
        %v434 = vadd.f32 %v433, 1e-05
        %v435 = vrsqrt.pop %v434
        %v436 = vmul.f32 %v435, %v434
        %v437 = vmul.f32 %v436, %v435
        %v438 = vmul.f32 0.5, %v437
        %v439 = vsub.f32 1.5, %v438
        %v440 = vmul.f32 %v435, %v439
        %vm441 = vweird.f32 %v434
        %vm442 = vweird.f32 %v435
        %vm443 = vmor %vm441, %vm442
        %v444 = vsel %vm443, %v435, %v440
        %v445 = vmul.f32 %v311, %v444
        %v446 = vperm.slane %v445, 0
        %v447 = vmul.f32 %v407, %v446
        %v448 = vmul.f32 %v422, %v445
        %v450 = vrot.slane %v448, 7
        %v452 = vsub.f32 %v311, %v450
        %v453 = vperm.slane %v452, 1
        %v454 = vadd.f32 %v447, %v453
        %v455 = vld [vmem:[%s4] sm:$0xf]
        %v456 = vpack.c.bf16 %v454, %v454
        %v458 = vsel %vm339, %v456, 0
        %vm460 = vcmask 1043456
        %v462 = vsel %vm460, %v455, 0
        %464 = vmatpush.bf16.msra.mxu0 0
        %465 = vmatpush.bf16.msra.mxu0 0
        %466 = vmatpush.bf16.msra.mxu0 0
        %467 = vmatpush.bf16.msra.mxu0 0
        %468 = vmatpush.bf16.msra.mxu0 0
        %469 = vmatpush.bf16.msra.mxu0 0
        %470 = vmatpush.bf16.msra.mxu0 0
        %471 = vmatpush.bf16.msra.mxu0 %v462
        %472 = vmatmul.bf16.gmra.mxu0 %v458
        %v473 = vpop.f32.mrf.mxu0
        %v474 = vadd.f32 0.0, %v473
        %v475 = vpop.f32.mrf.mxu0
        %476 = vdwg.mxu0
        %v477 = vperm.slane %v312, 1
        %v478 = vadd.f32 %v474, %v477
        %vm479 = vcmp.gt.f32.partialorder %v454, 0.0
        %v480 = vmul.f32 %v454, 0.2
        %v481 = vsel %vm479, %v454, %v480
        %v482 = vsel %vm339, %v481, 0.0
        %v483 = vrot.slane %v482, 4
        %v484 = vadd.f32 %v482, %v483
        %v485 = vrot.slane %v484, 2
        %v486 = vadd.f32 %v484, %v485
        %v487 = vrot.slane %v486, 1
        %v488 = vadd.f32 %v486, %v487
        %v489 = vmul.f32 %v488, %v421
        %v490 = vmul.f32 %v481, %v481
        %v491 = vsel %vm339, %v490, 0.0
        %v492 = vrot.slane %v491, 4
        %v493 = vadd.f32 %v491, %v492
        %v494 = vrot.slane %v493, 2
        %v495 = vadd.f32 %v493, %v494
        %v496 = vrot.slane %v495, 1
        %v497 = vadd.f32 %v495, %v496
        %v498 = vmul.f32 %v497, %v421
        %v499 = vmul.f32 %v489, %v489
        %v500 = vsub.f32 %v498, %v499
        %v501 = vadd.f32 %v500, 1e-05
        %v502 = vrsqrt.pop %v501
        %v503 = vmul.f32 %v502, %v501
        %v504 = vmul.f32 %v503, %v502
        %v505 = vmul.f32 0.5, %v504
        %v506 = vsub.f32 1.5, %v505
        %v507 = vmul.f32 %v502, %v506
        %vm508 = vweird.f32 %v501
        %vm509 = vweird.f32 %v502
        %vm510 = vmor %vm508, %vm509
        %v511 = vsel %vm510, %v502, %v507
        %v512 = vmul.f32 %v311, %v511
        %v513 = vperm.slane %v512, 2
        %v514 = vmul.f32 %v481, %v513
        %v515 = vmul.f32 %v489, %v512
        %v517 = vrot.slane %v515, 7
        %v519 = vsub.f32 %v311, %v517
        %v520 = vperm.slane %v519, 3
        %v521 = vadd.f32 %v514, %v520
        %v522 = vld [vmem:[%s5] sm:$0xf]
        %v523 = vld [vmem:[%s5 + $0x4] sm:$0xf]
        %v524 = vld [vmem:[%s5 + $0x8] sm:$0xf]
        %v525 = vpack.c.bf16 %v521, %v521
        %v527 = vunpack.c.l.b16 %v525
        %v528 = vpack.c.b16 %v527, %v527
        %v530 = vshrl.u32 %v528, 16
        %v532 = vrot.slane %v530, 7
        %v533 = vshll.u32 %v528, 16
        %v535 = vor.u32 %v532, %v533
        %v537 = vsel %vm326, 0, %v535
        %v538 = vrot.slane %v533, 1
        %v539 = vor.u32 %v530, %v538
        %v541 = vsel %vm352, %v539, 0
        %542 = vrot.lane.b32.xlu0 %v528, 8
        %v543 = vpop.permute.xlu0 %542
        %545 = vrot.lane.b32.xlu0 %v541, 16
        %v546 = vpop.permute.xlu0 %545
        %v549 = vsel %vm339, %v537, %v543
        %vm550 = vcmask 130048
        %v552 = vsel %vm550, %v549, %v546
        %v556 = vunpack.c.l.b16 %v522
        %v557 = vunpack.c.l.b16 %v523
        %v558 = vunpack.c.l.b16 %v524
        %v559 = vpack.c.b16 %v557, %v556
        %v560 = vpack.c.b16 %v558, %v558
        %vm562 = vcmask 195584
        %v563 = vsel %vm562, %v552, 0
        %v566 = vsel %vm460, %v560, 0
        %568 = vmatpush.bf16.msra.mxu0 0
        %569 = vmatpush.bf16.msra.mxu0 0
        %570 = vmatpush.bf16.msra.mxu0 0
        %571 = vmatpush.bf16.msra.mxu0 0
        %572 = vmatpush.bf16.msra.mxu0 0
        %573 = vmatpush.bf16.msra.mxu0 0
        %574 = vmatpush.bf16.msra.mxu0 %v566
        %575 = vmatpush.bf16.msra.mxu0 %v559
        %576 = vmatmul.bf16.gmra.mxu0 %v563
        %v577 = vpop.f32.mrf.mxu0
        %v578 = vadd.f32 0.0, %v577
        %v579 = vpop.f32.mrf.mxu0
        %580 = vdwg.mxu0
        %v581 = vperm.slane %v312, 2
        %v582 = vadd.f32 %v578, %v581
        %vm583 = vcmp.gt.f32.partialorder %v582, 0.0
        %v584 = vmul.f32 %v582, 0.2
        %v585 = vsel %vm583, %v582, %v584
        %s586 = scalar_lea.vmem %s5, 12
        %v587 = vld [vmem:[%s586] sm:$0xf]
        %v588 = vld [vmem:[%s586 + $0x4] sm:$0xf]
        %v589 = vld [vmem:[%s586 + $0x8] sm:$0xf]
        %v590 = vpack.c.bf16 %v585, %v585
        %v592 = vunpack.c.l.b16 %v590
        %v593 = vpack.c.b16 %v592, %v592
        %v595 = vshrl.u32 %v593, 16
        %v597 = vrot.slane %v595, 7
        %v598 = vshll.u32 %v593, 16
        %v600 = vor.u32 %v597, %v598
        %v602 = vsel %vm326, 0, %v600
        %v603 = vrot.slane %v598, 1
        %v604 = vor.u32 %v595, %v603
        %v606 = vsel %vm352, %v604, 0
        %607 = vrot.lane.b32.xlu0 %v593, 8
        %v608 = vpop.permute.xlu0 %607
        %610 = vrot.lane.b32.xlu0 %v606, 16
        %v611 = vpop.permute.xlu0 %610
        %v614 = vsel %vm339, %v602, %v608
        %v616 = vsel %vm550, %v614, %v611
        %v620 = vunpack.c.l.b16 %v587
        %v621 = vunpack.c.l.b16 %v588
        %v622 = vunpack.c.l.b16 %v589
        %v623 = vpack.c.b16 %v621, %v620
        %v624 = vpack.c.b16 %v622, %v622
        %v626 = vsel %vm562, %v616, 0
        %v629 = vsel %vm460, %v624, 0
        %631 = vmatpush.bf16.msra.mxu0 0
        %632 = vmatpush.bf16.msra.mxu0 0
        %633 = vmatpush.bf16.msra.mxu0 0
        %634 = vmatpush.bf16.msra.mxu0 0
        %635 = vmatpush.bf16.msra.mxu0 0
        %636 = vmatpush.bf16.msra.mxu0 0
        %637 = vmatpush.bf16.msra.mxu0 %v629
        %638 = vmatpush.bf16.msra.mxu0 %v623
        %639 = vmatmul.bf16.gmra.mxu0 %v626
        %v640 = vpop.f32.mrf.mxu0
        %v641 = vadd.f32 0.0, %v640
        %v642 = vpop.f32.mrf.mxu0
        %643 = vdwg.mxu0
        %v644 = vperm.slane %v312, 3
        %v645 = vadd.f32 %v641, %v644
        %v646 = vadd.f32 %v645, %v478
        %647 = vxpose.xlu0.b32.start [1/16] %v646, 128
        %648 = vxpose.xlu0.b32.cont [2/16] 0.0, 128
        %649 = vxpose.xlu0.b32.cont [3/16] 0.0, 128
        %650 = vxpose.xlu0.b32.cont [4/16] 0.0, 128
        %651 = vxpose.xlu0.b32.cont [5/16] 0.0, 128
        %652 = vxpose.xlu0.b32.cont [6/16] 0.0, 128
        %653 = vxpose.xlu0.b32.cont [7/16] 0.0, 128
        %654 = vxpose.xlu0.b32.cont [8/16] 0.0, 128
        %655 = vxpose.xlu0.b32.cont [9/16] 0.0, 128
        %656 = vxpose.xlu0.b32.cont [10/16] 0.0, 128
        %657 = vxpose.xlu0.b32.cont [11/16] 0.0, 128
        %658 = vxpose.xlu0.b32.cont [12/16] 0.0, 128
        %659 = vxpose.xlu0.b32.cont [13/16] 0.0, 128
        %660 = vxpose.xlu0.b32.cont [14/16] 0.0, 128
        %661 = vxpose.xlu0.b32.cont [15/16] 0.0, 128
        %662 = vxpose.xlu0.b32.end [16/16] 0.0, 128
        %v663 = vpop.trf.xlu0
        %v664 = vpop.trf.xlu0
        %v665 = vpop.trf.xlu0
        %v666 = vpop.trf.xlu0
        %v667 = vpop.trf.xlu0
        %v668 = vpop.trf.xlu0
        %v669 = vpop.trf.xlu0
        %v670 = vpop.trf.xlu0
        %v671 = vpop.trf.xlu0
        %v672 = vpop.trf.xlu0
        %v673 = vpop.trf.xlu0
        %v674 = vpop.trf.xlu0
        %v675 = vpop.trf.xlu0
        %v676 = vpop.trf.xlu0
        %v677 = vpop.trf.xlu0
        %v678 = vpop.trf.xlu0
        %679 = vst.msk [vmem:[%s295] sm:$0xff] %vm339, %v663
        %s680 = sand.u32 %s191, 1
        %s681 = scalar_lea.sflag [#allocation3], %s680
        %s682 = sand.u32 %s191, 1
        %s683 = smul.addr %s682, 8
        %s684 = scalar_lea.vmem [#allocation2], %s683
        // Predicated region
        $region49: #{tpu_custom_call.1} parent=47 // pred_check
          %p685 = pneg %p201
        $region50: #{tpu_custom_call.1} parent=47 // pred_check_branch
          %687 = sbr.rel (%p685) target = $region52
        $region51: #{tpu_custom_call.1} parent=47 // pred_region
          %689 = vsyncadd %s681, 0
          %s690 = smul.addr %s21, 8
          %s691 = scalar_lea.hbm %s7, %s690
          %s693 = sshll.u32 %s684, 4
          %s694 = int_to_ptr.vmem [resolvable:$true] %s693
          %s695 = sshll.u32 %s691, 4
          %s696 = int_to_ptr.hbm [resolvable:$true] %s695
          %698 = dma.vmem_to_hbm [thread:$0]  %s694, 128, %s696, %s681
        $region52: #{tpu_custom_call.1} parent=47 // pred_fallthru
          _
      $region48: #{tpu_custom_call.1} parent=5 // pred_fallthru
        _
      %p699 = scmp.le.s32.totalorder 2, %s16
      // Predicated region
      $region53: #{tpu_custom_call.1} parent=5 // pred_check
        %p700 = pneg %p699
      $region54: #{tpu_custom_call.1} parent=5 // pred_check_branch
        %702 = sbr.rel (%p700) target = $region56
      $region55: #{tpu_custom_call.1} parent=5 // pred_region
        %s703 = ssub.s32 %s16, 2
        // Predicated region
        $region57: #{tpu_custom_call.1} parent=55 // pred_check
          %p704 = pneg %p207
        $region58: #{tpu_custom_call.1} parent=55 // pred_check_branch
          %706 = sbr.rel (%p704) target = $region60
        $region59: #{tpu_custom_call.1} parent=55 // pred_region
          %s707 = sand.u32 %s192, 1
          %s708 = scalar_lea.sflag [#allocation3], %s707
          %s709 = sand.u32 %s192, 1
          %s710 = smul.addr %s709, 8
          %s711 = scalar_lea.vmem [#allocation2], %s710
          %713 = dma.done %s708, 128
        $region60: #{tpu_custom_call.1} parent=55 // pred_fallthru
          _
      $region56: #{tpu_custom_call.1} parent=5 // pred_fallthru
        _
    $region6: #{tpu_custom_call.1} parent=1 // loop_footer
      %s20 = sadd.s32 1, %s16
    $region7: #{tpu_custom_call.1} parent=1 // loop_footer_branch
      %15 = sbr.rel target = $region3
    $region8: #{tpu_custom_call.1} parent=1 // loop_exit
      _
    %714 = vsyncpa [#allocation3], 1
    %s715 = scalar_lea.sflag [#allocation3], 1
    %716 = vsyncpa %s715, 1

</llo_original>
